<compile_context>
chip_gen: v7x
topology: tpu7x:2x2x1
jax: 0.10.0
libtpu: 0.0.40
codegen_flags: <defaults>
</compile_context>

<pallas_src>
import jax
import jax.numpy as jnp
from jax.experimental import pallas as pl
from jax.experimental.pallas import tpu as pltpu

HIDDEN = 200       # nn.Linear hidden width in the PyTorch module
HIDDEN_PAD = 256   # padded to a multiple of 128 lanes
PAD = 4            # trailing zero columns appended in forward()


def _round_up(x, m):
    return (x + m - 1) // m * m


def _tpu_kind():
    try:
        return jax.devices()[0].device_kind.lower()
    except Exception:
        return ""


def _is_v7(kind):
    return ("v7" in kind) or ("7x" in kind)


def _has_bf16_eup(kind):
    # bf16 EUP/VPU exists on v6e and v7x; v5e/older lack it -> keep f32 there.
    return ("v6" in kind) or _is_v7(kind)


def _make_kernel(act_dtype):
    """Build the row-tile kernel with a compile-time activation dtype."""

    def kernel(x_ref,
               w1_ref, b1_ref,
               w2_ref, b2_ref,
               w3_ref, b3_ref,
               w4_ref, b4_ref,
               o_ref):
        def act(z):
            # sigmoid(z) = 0.5 * tanh(0.5*z) + 0.5  -> single EUP op (tanh);
            # the extra mul/add are free VALU filler.  On v6e/v7x act_dtype is
            # bf16 (faster EUP), on v5e it stays f32.
            z = (z * 0.5).astype(act_dtype)
            h = jnp.tanh(z) * 0.5 + 0.5
            return h.astype(jnp.bfloat16)       # next matmul consumes bf16

        x = x_ref[...].astype(jnp.bfloat16)
        h = act(jnp.dot(x, w1_ref[...],
                        preferred_element_type=jnp.float32) + b1_ref[...])
        h = act(jnp.dot(h, w2_ref[...],
                        preferred_element_type=jnp.float32) + b2_ref[...])
        h = act(jnp.dot(h, w3_ref[...],
                        preferred_element_type=jnp.float32) + b3_ref[...])
        y = jnp.dot(h, w4_ref[...],
                    preferred_element_type=jnp.float32) + b4_ref[...]

        # W4/b4 already carry the PAD zero columns -> single full-width store.
        o_ref[...] = y.astype(o_ref.dtype)

    return kernel


def prepare_params(params):
    """Pad HIDDEN 200 -> 256, fold the PAD zero tail into W4/b4, cast W to bf16.

    Padded hidden lanes get zero input weights + zero bias -> pre-act 0 ->
    activation 0.5; the matching *input rows* of the next layer's weights are
    zero, so those lanes contribute exactly 0.  (bf16 weights: fine per-call;
    keep f32 weights if end-to-end ODE trajectory drift matters.)
    """
    w1, b1, w2, b2, w3, b3, w4, b4 = params
    hp = HIDDEN_PAD - HIDDEN

    pad_cols = lambda w, n: jnp.pad(w, ((0, 0), (0, n)))   # pad output features
    pad_rows = lambda w, n: jnp.pad(w, ((0, n), (0, 0)))   # pad input features

    w1p = pad_cols(w1, hp)
    w2p = pad_cols(pad_rows(w2, hp), hp)
    w3p = pad_cols(pad_rows(w3, hp), hp)
    w4p = pad_cols(pad_rows(w4, hp), PAD)                  # zero tail folded in

    b1p = jnp.pad(b1, ((0, 0), (0, hp))).astype(jnp.float32)
    b2p = jnp.pad(b2, ((0, 0), (0, hp))).astype(jnp.float32)
    b3p = jnp.pad(b3, ((0, 0), (0, hp))).astype(jnp.float32)
    b4p = jnp.pad(b4, ((0, 0), (0, PAD))).astype(jnp.float32)

    bf16 = lambda w: w.astype(jnp.bfloat16)
    return (bf16(w1p), b1p, bf16(w2p), b2p, bf16(w3p), b3p, bf16(w4p), b4p)


def ode_func_pallas(y, params, *, tile_rows=2048):
    """y: [M, K, N1] -> [M, K, N2 + PAD]  (ODEFunc.forward; `t` is unused)."""
    w1, b1, w2, b2, w3, b3, w4, b4 = params
    M, K, N1 = y.shape
    n_out = w4.shape[1]            # N2 + PAD (zero tail folded into W4)
    R = M * K

    kind = _tpu_kind()
    v7 = _is_v7(kind)
    act_dtype = jnp.bfloat16 if _has_bf16_eup(kind) else jnp.float32

    # Adaptive row tiling: >= 2 grid steps (megacore), last tile never mostly
    # padding, tr a multiple of 8 (sublane constraint).  tile_rows is sweepable
    # (1024/2048/4096); the default keeps live f32 intermediates well under the
    # per-generation VMEM caps below.
    n_tiles = max(pl.cdiv(R, tile_rows), 2)
    if v7:
        n_tiles += n_tiles % 2     # even number of steps for the two TCs
    tr = _round_up(pl.cdiv(R, n_tiles), 8)
    r_pad = _round_up(R, tr)

    x = y.reshape(R, N1)
    if r_pad != R:
        x = jnp.pad(x, ((0, r_pad - R), (0, 0)))

    tile = lambda shape: pl.BlockSpec(shape, lambda i: (i, 0))
    resident = lambda shape: pl.BlockSpec(shape, lambda i: (0, 0))  # VMEM-resident

    # v7x: shard the row grid across both TensorCores; elsewhere PARALLEL.
    row_sem = getattr(pltpu, "CORE_PARALLEL", pltpu.PARALLEL) if v7 else pltpu.PARALLEL
    vmem_limit = (32 if v7 else 64) * 1024 * 1024

    out = pl.pallas_call(
        _make_kernel(act_dtype),
        out_shape=jax.ShapeDtypeStruct((r_pad, n_out), y.dtype),
        grid=(r_pad // tr,),
        in_specs=[
            tile((tr, N1)),
            resident(w1.shape), resident(b1.shape),
            resident(w2.shape), resident(b2.shape),
            resident(w3.shape), resident(b3.shape),
            resident(w4.shape), resident(b4.shape),
        ],
        out_specs=tile((tr, n_out)),
        compiler_params=pltpu.CompilerParams(
            dimension_semantics=(row_sem,),
            vmem_limit_bytes=vmem_limit,
        ),
    )(x, w1, b1, w2, b2, w3, b3, w4, b4)

    return out[:R].reshape(M, K, n_out)


def ode_func_pallas_multi(ys, params, **kw):
    """Fuse several ODEFunc evaluations (e.g. the 4 RK stages) into one launch.

    ys: list of [Mi, Ki, N1] arrays (same N1).  Returns list of [Mi, Ki, N2+4].
    """
    flats = [yy.reshape(-1, yy.shape[-1]) for yy in ys]
    rows = [f.shape[0] for f in flats]
    big = jnp.concatenate(flats, axis=0)[None]           # [1, sum(R), N1]
    out = ode_func_pallas(big, params, **kw)[0]
    outs, off = [], 0
    for yy, r in zip(ys, rows):
        outs.append(out[off:off + r].reshape(*yy.shape[:-1], out.shape[-1]))
        off += r
    return outs


def init_params(key, N1, N2, dtype=jnp.float32):
    """Matches nn.init.normal_(std=0.1) on weights, constant_(0) on biases."""
    ks = jax.random.split(key, 4)

    def lin(k, fan_in, fan_out):
        w = (0.1 * jax.random.normal(k, (fan_in, fan_out))).astype(dtype)
        b = jnp.zeros((1, fan_out), dtype)
        return w, b

    w1, b1 = lin(ks[0], N1, HIDDEN)
    w2, b2 = lin(ks[1], HIDDEN, HIDDEN)
    w3, b3 = lin(ks[2], HIDDEN, HIDDEN)
    w4, b4 = lin(ks[3], HIDDEN, N2)
    return (w1, b1, w2, b2, w3, b3, w4, b4)


def ode_func_ref(y, params):
    """Plain-JAX (f32) reference of the PyTorch forward, for verification."""
    w1, b1, w2, b2, w3, b3, w4, b4 = params
    h = jax.nn.sigmoid(y @ w1 + b1[0])
    h = jax.nn.sigmoid(h @ w2 + b2[0])
    h = jax.nn.sigmoid(h @ w3 + b3[0])
    y_nn = h @ w4 + b4[0]
    M, K, _ = y.shape
    return jnp.concatenate([y_nn, jnp.zeros((M, K, PAD), y_nn.dtype)], axis=-1)


if __name__ == "__main__":
    # Small shapes consistent with forward(): y is [M, K, N1]
    M, K, N1, N2 = 2, 8, 8, 12
    key = jax.random.PRNGKey(0)
    k_param, k_in = jax.random.split(key)

    raw_params = init_params(k_param, N1, N2)
    params = prepare_params(raw_params)
    y = jax.random.normal(k_in, (M, K, N1), dtype=jnp.float32)

    # bf16 matmul operands (+ bf16 tanh activations on v6e/v7x), f32 accum,
    # vs an all-f32 reference -> bf16-level tolerance.
    TOL = 4e-2

    out = jax.block_until_ready(ode_func_pallas(y, params))
    ref = ode_func_ref(y, raw_params)
    assert out.shape == (M, K, N2 + PAD), out.shape
    assert jnp.allclose(out, ref, atol=TOL, rtol=TOL), "mismatch vs reference"
    assert bool(jnp.all(out[..., N2:] == 0.0)), "zero tail not exact"

    # Multiple grid steps + padded partial tile (adaptive tiling path).
    M2, K2 = 37, 64                       # R = 2368 -> 2 tiles of 1184
    y2 = jax.random.normal(jax.random.PRNGKey(1), (M2, K2, N1), dtype=jnp.float32)
    out2 = jax.block_until_ready(ode_func_pallas(y2, params))
    ref2 = ode_func_ref(y2, raw_params)
    assert out2.shape == (M2, K2, N2 + PAD)
    assert jnp.allclose(out2, ref2, atol=TOL, rtol=TOL), "mismatch (tiled)"

    # RK-stage batching: fuse 4 ODEFunc evaluations into one kernel launch.
    stages = [jax.random.normal(jax.random.PRNGKey(10 + s), (M2, K2, N1),
                                dtype=jnp.float32) for s in range(4)]
    outs = jax.block_until_ready(ode_func_pallas_multi(stages, params))
    for s_in, s_out in zip(stages, outs):
        assert s_out.shape == (M2, K2, N2 + PAD)
        assert jnp.allclose(s_out, ode_func_ref(s_in, raw_params),
                            atol=TOL, rtol=TOL), "mismatch (batched stages)"

    # TODO(synk): if trajectory drift over many solver steps matters, keep the
    # weights in f32 (MXU accepts f32 at reduced rate) and re-validate end-to-end.
    print("KERNEL_OK")
</pallas_src>

<mosaic_0001>
module attributes {stable_mosaic.version = 11 : i64} {
  func.func @kernel(%arg0: i32, %arg1: memref<8x8xf32, #tpu.memory_space<vmem>>, %arg2: memref<8x256xbf16, #tpu.memory_space<vmem>>, %arg3: memref<1x256xf32, #tpu.memory_space<vmem>>, %arg4: memref<256x256xbf16, #tpu.memory_space<vmem>>, %arg5: memref<1x256xf32, #tpu.memory_space<vmem>>, %arg6: memref<256x256xbf16, #tpu.memory_space<vmem>>, %arg7: memref<1x256xf32, #tpu.memory_space<vmem>>, %arg8: memref<256x16xbf16, #tpu.memory_space<vmem>>, %arg9: memref<1x16xf32, #tpu.memory_space<vmem>>, %arg10: memref<8x16xf32, #tpu.memory_space<vmem>>) attributes {dimension_semantics = [#tpu.dimension_semantics<parallel>], iteration_bounds = array<i64: 2>, scalar_prefetch = 0 : i64, scratch_operands = 0 : i64, tpu.core_type = #tpu.core_type<tc>, window_params = [{transform_indices = @transform_0, window_bounds = array<i64: 8, 8>}, {pipeline_mode = #tpu.pipeline_mode<synchronous>, transform_indices = @transform_1, window_bounds = array<i64: 8, 256>}, {pipeline_mode = #tpu.pipeline_mode<synchronous>, transform_indices = @transform_2, window_bounds = array<i64: 1, 256>}, {pipeline_mode = #tpu.pipeline_mode<synchronous>, transform_indices = @transform_3, window_bounds = array<i64: 256, 256>}, {pipeline_mode = #tpu.pipeline_mode<synchronous>, transform_indices = @transform_4, window_bounds = array<i64: 1, 256>}, {pipeline_mode = #tpu.pipeline_mode<synchronous>, transform_indices = @transform_5, window_bounds = array<i64: 256, 256>}, {pipeline_mode = #tpu.pipeline_mode<synchronous>, transform_indices = @transform_6, window_bounds = array<i64: 1, 256>}, {pipeline_mode = #tpu.pipeline_mode<synchronous>, transform_indices = @transform_7, window_bounds = array<i64: 256, 16>}, {pipeline_mode = #tpu.pipeline_mode<synchronous>, transform_indices = @transform_8, window_bounds = array<i64: 1, 16>}, {transform_indices = @transform_9, window_bounds = array<i64: 8, 16>}]} {
    %c0 = arith.constant 0 : index
    %c0_0 = arith.constant 0 : index
    %0 = vector.load %arg1[%c0, %c0_0] : memref<8x8xf32, #tpu.memory_space<vmem>>, vector<8x8xf32>
    %1 = arith.truncf %0 : vector<8x8xf32> to vector<8x8xbf16>
    %c0_1 = arith.constant 0 : index
    %c0_2 = arith.constant 0 : index
    %2 = vector.load %arg2[%c0_1, %c0_2] : memref<8x256xbf16, #tpu.memory_space<vmem>>, vector<8x256xbf16>
    %cst = arith.constant dense<0.000000e+00> : vector<8x256xf32>
    %3 = tpu.matmul %1, %2, %cst {dimension_numbers = #tpu.dot_dimension_numbers<[1], [0], [0], [1], [0, 0, 1, 1], [], []>} : vector<8x8xbf16>, vector<8x256xbf16>, vector<8x256xf32> -> vector<8x256xf32>
    %c0_3 = arith.constant 0 : index
    %c0_4 = arith.constant 0 : index
    %4 = vector.load %arg3[%c0_3, %c0_4] : memref<1x256xf32, #tpu.memory_space<vmem>>, vector<1x256xf32>
    %5 = vector.broadcast %4 : vector<1x256xf32> to vector<8x256xf32>
    %6 = arith.addf %3, %5 : vector<8x256xf32>
    %cst_5 = arith.constant 5.000000e-01 : f32
    %7 = vector.broadcast %cst_5 : f32 to vector<8x256xf32>
    %8 = arith.mulf %6, %7 : vector<8x256xf32>
    %9 = math.tanh %8 : vector<8x256xf32>
    %cst_6 = arith.constant 5.000000e-01 : f32
    %10 = vector.broadcast %cst_6 : f32 to vector<8x256xf32>
    %11 = arith.mulf %9, %10 : vector<8x256xf32>
    %cst_7 = arith.constant 5.000000e-01 : f32
    %12 = vector.broadcast %cst_7 : f32 to vector<8x256xf32>
    %13 = arith.addf %11, %12 : vector<8x256xf32>
    %14 = arith.truncf %13 : vector<8x256xf32> to vector<8x256xbf16>
    %c0_8 = arith.constant 0 : index
    %c0_9 = arith.constant 0 : index
    %15 = vector.load %arg4[%c0_8, %c0_9] : memref<256x256xbf16, #tpu.memory_space<vmem>>, vector<256x256xbf16>
    %cst_10 = arith.constant dense<0.000000e+00> : vector<8x256xf32>
    %16 = tpu.matmul %14, %15, %cst_10 {dimension_numbers = #tpu.dot_dimension_numbers<[1], [0], [0], [1], [0, 0, 1, 1], [], []>} : vector<8x256xbf16>, vector<256x256xbf16>, vector<8x256xf32> -> vector<8x256xf32>
    %c0_11 = arith.constant 0 : index
    %c0_12 = arith.constant 0 : index
    %17 = vector.load %arg5[%c0_11, %c0_12] : memref<1x256xf32, #tpu.memory_space<vmem>>, vector<1x256xf32>
    %18 = vector.broadcast %17 : vector<1x256xf32> to vector<8x256xf32>
    %19 = arith.addf %16, %18 : vector<8x256xf32>
    %cst_13 = arith.constant 5.000000e-01 : f32
    %20 = vector.broadcast %cst_13 : f32 to vector<8x256xf32>
    %21 = arith.mulf %19, %20 : vector<8x256xf32>
    %22 = math.tanh %21 : vector<8x256xf32>
    %cst_14 = arith.constant 5.000000e-01 : f32
    %23 = vector.broadcast %cst_14 : f32 to vector<8x256xf32>
    %24 = arith.mulf %22, %23 : vector<8x256xf32>
    %cst_15 = arith.constant 5.000000e-01 : f32
    %25 = vector.broadcast %cst_15 : f32 to vector<8x256xf32>
    %26 = arith.addf %24, %25 : vector<8x256xf32>
    %27 = arith.truncf %26 : vector<8x256xf32> to vector<8x256xbf16>
    %c0_16 = arith.constant 0 : index
    %c0_17 = arith.constant 0 : index
    %28 = vector.load %arg6[%c0_16, %c0_17] : memref<256x256xbf16, #tpu.memory_space<vmem>>, vector<256x256xbf16>
    %cst_18 = arith.constant dense<0.000000e+00> : vector<8x256xf32>
    %29 = tpu.matmul %27, %28, %cst_18 {dimension_numbers = #tpu.dot_dimension_numbers<[1], [0], [0], [1], [0, 0, 1, 1], [], []>} : vector<8x256xbf16>, vector<256x256xbf16>, vector<8x256xf32> -> vector<8x256xf32>
    %c0_19 = arith.constant 0 : index
    %c0_20 = arith.constant 0 : index
    %30 = vector.load %arg7[%c0_19, %c0_20] : memref<1x256xf32, #tpu.memory_space<vmem>>, vector<1x256xf32>
    %31 = vector.broadcast %30 : vector<1x256xf32> to vector<8x256xf32>
    %32 = arith.addf %29, %31 : vector<8x256xf32>
    %cst_21 = arith.constant 5.000000e-01 : f32
    %33 = vector.broadcast %cst_21 : f32 to vector<8x256xf32>
    %34 = arith.mulf %32, %33 : vector<8x256xf32>
    %35 = math.tanh %34 : vector<8x256xf32>
    %cst_22 = arith.constant 5.000000e-01 : f32
    %36 = vector.broadcast %cst_22 : f32 to vector<8x256xf32>
    %37 = arith.mulf %35, %36 : vector<8x256xf32>
    %cst_23 = arith.constant 5.000000e-01 : f32
    %38 = vector.broadcast %cst_23 : f32 to vector<8x256xf32>
    %39 = arith.addf %37, %38 : vector<8x256xf32>
    %40 = arith.truncf %39 : vector<8x256xf32> to vector<8x256xbf16>
    %c0_24 = arith.constant 0 : index
    %c0_25 = arith.constant 0 : index
    %41 = vector.load %arg8[%c0_24, %c0_25] : memref<256x16xbf16, #tpu.memory_space<vmem>>, vector<256x16xbf16>
    %cst_26 = arith.constant dense<0.000000e+00> : vector<8x16xf32>
    %42 = tpu.matmul %40, %41, %cst_26 {dimension_numbers = #tpu.dot_dimension_numbers<[1], [0], [0], [1], [0, 0, 1, 1], [], []>} : vector<8x256xbf16>, vector<256x16xbf16>, vector<8x16xf32> -> vector<8x16xf32>
    %c0_27 = arith.constant 0 : index
    %c0_28 = arith.constant 0 : index
    %43 = vector.load %arg9[%c0_27, %c0_28] : memref<1x16xf32, #tpu.memory_space<vmem>>, vector<1x16xf32>
    %44 = vector.broadcast %43 : vector<1x16xf32> to vector<8x16xf32>
    %45 = arith.addf %42, %44 : vector<8x16xf32>
    %c0_29 = arith.constant 0 : index
    %c0_30 = arith.constant 0 : index
    %46 = vector.load %arg10[%c0_29, %c0_30] : memref<8x16xf32, #tpu.memory_space<vmem>>, vector<8x16xf32>
    tpu.vector_store %arg10[%c0_29, %c0_30], %45 {strides = array<i32>} : memref<8x16xf32, #tpu.memory_space<vmem>>, vector<8x16xf32>,
    return
  }
  func.func @transform_0(%arg0: i32) -> (i32, i32) {
    %c0_i32 = arith.constant 0 : i32
    %c0_i32_0 = arith.constant 0 : i32
    return %arg0, %c0_i32 : i32, i32
  }
  func.func @transform_1(%arg0: i32) -> (i32, i32) {
    %c0_i32 = arith.constant 0 : i32
    %c0_i32_0 = arith.constant 0 : i32
    %c0_i32_1 = arith.constant 0 : i32
    return %c0_i32, %c0_i32_0 : i32, i32
  }
  func.func @transform_2(%arg0: i32) -> (i32, i32) {
    %c0_i32 = arith.constant 0 : i32
    %c0_i32_0 = arith.constant 0 : i32
    %c0_i32_1 = arith.constant 0 : i32
    return %c0_i32, %c0_i32_0 : i32, i32
  }
  func.func @transform_3(%arg0: i32) -> (i32, i32) {
    %c0_i32 = arith.constant 0 : i32
    %c0_i32_0 = arith.constant 0 : i32
    %c0_i32_1 = arith.constant 0 : i32
    return %c0_i32, %c0_i32_0 : i32, i32
  }
  func.func @transform_4(%arg0: i32) -> (i32, i32) {
    %c0_i32 = arith.constant 0 : i32
    %c0_i32_0 = arith.constant 0 : i32
    %c0_i32_1 = arith.constant 0 : i32
    return %c0_i32, %c0_i32_0 : i32, i32
  }
  func.func @transform_5(%arg0: i32) -> (i32, i32) {
    %c0_i32 = arith.constant 0 : i32
    %c0_i32_0 = arith.constant 0 : i32
    %c0_i32_1 = arith.constant 0 : i32
    return %c0_i32, %c0_i32_0 : i32, i32
  }
  func.func @transform_6(%arg0: i32) -> (i32, i32) {
    %c0_i32 = arith.constant 0 : i32
    %c0_i32_0 = arith.constant 0 : i32
    %c0_i32_1 = arith.constant 0 : i32
    return %c0_i32, %c0_i32_0 : i32, i32
  }
  func.func @transform_7(%arg0: i32) -> (i32, i32) {
    %c0_i32 = arith.constant 0 : i32
    %c0_i32_0 = arith.constant 0 : i32
    %c0_i32_1 = arith.constant 0 : i32
    return %c0_i32, %c0_i32_0 : i32, i32
  }
  func.func @transform_8(%arg0: i32) -> (i32, i32) {
    %c0_i32 = arith.constant 0 : i32
    %c0_i32_0 = arith.constant 0 : i32
    %c0_i32_1 = arith.constant 0 : i32
    return %c0_i32, %c0_i32_0 : i32, i32
  }
  func.func @transform_9(%arg0: i32) -> (i32, i32) {
    %c0_i32 = arith.constant 0 : i32
    %c0_i32_0 = arith.constant 0 : i32
    return %arg0, %c0_i32 : i32, i32
  }
}

</mosaic_0001>

<llo_original>
// kernel: tpu_custom_call.1
$region0: #{tpu_custom_call.1}
  #allocation0 [shape = 'u32[]', space=smem, size = 0x4, offset = 0x4, fixed_abs, tag = 'smem constant byte address 0x4 - core index']
  #allocation1 [shape = 'u32[144,128]{1,0:T(1,128)}', space=vmem, size = 0x12000, scoped, tag = 'internal scratch']
  %s0 = inlined_call_operand.hbm [shape: f32[16,8], index: 0, kind: input, shape index: {}]
  %s1 = inlined_call_operand.hbm [shape: bf16[8,256], index: 1, kind: input, shape index: {}]
  %s2 = inlined_call_operand.hbm [shape: f32[1,256], index: 2, kind: input, shape index: {}]
  %s3 = inlined_call_operand.hbm [shape: bf16[256,256], index: 3, kind: input, shape index: {}]
  %s4 = inlined_call_operand.hbm [shape: f32[1,256], index: 4, kind: input, shape index: {}]
  %s5 = inlined_call_operand.hbm [shape: bf16[256,256], index: 5, kind: input, shape index: {}]
  %s6 = inlined_call_operand.hbm [shape: f32[1,256], index: 6, kind: input, shape index: {}]
  %s7 = inlined_call_operand.hbm [shape: bf16[256,16], index: 7, kind: input, shape index: {}]
  %s8 = inlined_call_operand.hbm [shape: f32[1,16], index: 8, kind: input, shape index: {}]
  %s9 = inlined_call_operand.hbm [shape: f32[16,16], index: 9, kind: output, shape index: {}]
  %s10 = sld [smem:[#allocation0]]
  $region105: #{tpu_custom_call.1} parent=0
    _
  %s12 = ssub.s32 1, %s10
  %s13 = scalar_select 0, %s12, %s10
  $region1: #{tpu_custom_call.1} parent=0
    #allocation2 [shape = 'u8[8192]{0}', space=vmem, size = 0x2000, scoped, tag = 'input window, operand 0']
    #allocation3 [shape = 's32[2]{0}', space=sflag, size = 0x8, scoped, tag = 'scoped memory for tpu_custom_call.1']
    #allocation4 [shape = 's32[2]{0}', space=sflag, size = 0x8, scoped, tag = 'scoped memory for tpu_custom_call.1']
    #allocation5 [shape = 'u8[4096]{0}', space=vmem, size = 0x1000, scoped, tag = 'input window, operand 1, single buffered']
    #allocation6 [shape = 's32[1]{0}', space=sflag, size = 0x4, scoped, tag = 'scoped memory for tpu_custom_call.1']
    #allocation7 [shape = 'u8[1024]{0}', space=vmem, size = 0x400, scoped, tag = 'input window, operand 2, single buffered']
    #allocation8 [shape = 'u8[131072]{0}', space=vmem, size = 0x20000, scoped, tag = 'input window, operand 3, single buffered']
    #allocation9 [shape = 's32[1]{0}', space=sflag, size = 0x4, scoped, tag = 'scoped memory for tpu_custom_call.1']
    #allocation10 [shape = 'u8[1024]{0}', space=vmem, size = 0x400, scoped, tag = 'input window, operand 4, single buffered']
    #allocation11 [shape = 'u8[131072]{0}', space=vmem, size = 0x20000, scoped, tag = 'input window, operand 5, single buffered']
    #allocation12 [shape = 's32[1]{0}', space=sflag, size = 0x4, scoped, tag = 'scoped memory for tpu_custom_call.1']
    #allocation13 [shape = 'u8[1024]{0}', space=vmem, size = 0x400, scoped, tag = 'input window, operand 6, single buffered']
    #allocation14 [shape = 'u8[65536]{0}', space=vmem, size = 0x10000, scoped, tag = 'input window, operand 7, single buffered']
    #allocation15 [shape = 's32[1]{0}', space=sflag, size = 0x4, scoped, tag = 'scoped memory for tpu_custom_call.1']
    #allocation16 [shape = 'u8[512]{0}', space=vmem, size = 0x400, scoped, tag = 'input window, operand 8, single buffered']
    #allocation17 [shape = 'u8[8192]{0}', space=vmem, size = 0x2000, scoped, tag = 'output window, operand 0']
    %14 = vsyncpa [#allocation3], 0
    %s15 = scalar_lea.sflag [#allocation3], 1
    %16 = vsyncpa %s15, 0
    %17 = vsyncpa [#allocation6], 0
    %18 = vsyncpa [#allocation9], 0
    %19 = vsyncpa [#allocation12], 0
    %20 = vsyncpa [#allocation15], 0
    %21 = vsyncpa [#allocation4], 0
    %s22 = scalar_lea.sflag [#allocation4], 1
    %23 = vsyncpa %s22, 0
    loop: start=0, step=1, limit=4
    $region2: #{tpu_custom_call.1} parent=1 // loop_pre_header
      _
    $region3: #{tpu_custom_call.1} parent=1 // loop_header
      %s25 = sphi 0, %s29
      %p26 = scmp.ge.s32.totalorder %s25, 4
      %s35 = sphi 0, %s37
      %s38 = sphi 0, %s35
      %s39 = sphi 0, %s38
      %s55 = sphi 0, %s39
      %s59 = sphi 0, %s59
      %s61 = sphi 0, %s59
      %s62 = sphi 0, %s61
      %s76 = sphi 0, %s62
      %s80 = sphi 0, %s80
      %s82 = sphi 0, %s80
      %s83 = sphi 0, %s82
      %s97 = sphi 0, %s83
      %s101 = sphi 0, %s101
      %s103 = sphi 0, %s101
      %s104 = sphi 0, %s103
      %s118 = sphi 0, %s104
      %s122 = sphi 0, %s122
      %s124 = sphi 0, %s122
      %s125 = sphi 0, %s124
      %s139 = sphi 0, %s125
      %s143 = sphi 0, %s143
      %s145 = sphi 0, %s143
      %s146 = sphi 0, %s145
      %s160 = sphi 0, %s146
      %s164 = sphi 0, %s164
      %s166 = sphi 0, %s164
      %s167 = sphi 0, %s166
      %s181 = sphi 0, %s167
      %s185 = sphi 0, %s185
      %s187 = sphi 0, %s185
      %s188 = sphi 0, %s187
      %s202 = sphi 0, %s188
      %s206 = sphi 0, %s206
      %s208 = sphi 0, %s206
      %s209 = sphi 0, %s208
      %s223 = sphi 0, %s209
      %s229 = sphi 0, %s231
      %s232 = sphi 0, %s229
      %s233 = sphi 0, %s232
      %s249 = sphi 0, %s233
    $region4: #{tpu_custom_call.1} parent=1 // loop_header_branch
      %28 = sbr.rel (%p26) target = $region8
    $region5: #{tpu_custom_call.1} parent=1 // loop_body
      %s30 = ssub.s32 %s25, 1
      %s31 = ssub.s32 %s25, 2
      %s32 = sadd.s32 %s25, 1
      %s33 = ssub.s32 %s25, %s32
      %p34 = scmp.eq.s32.totalorder %s33, 0
      %s36 = sadd.s32 %s35, 1
      %s37 = scalar_select %p34, %s35, %s36
      %p40 = pneg %p34
      %p41 = scmp.eq.s32.totalorder %s25, 1
      %p42 = por %p40, %p41
      %p43 = scmp.ne.s32.totalorder %s35, %s38
      %p44 = scmp.eq.s32.totalorder %s25, 0
      %p45 = por %p43, %p44
      %p46 = scmp.ne.s32.totalorder %s35, %s38
      %p47 = scmp.eq.s32.totalorder %s30, 1
      %p48 = por %p46, %p47
      %p49 = scmp.ne.s32.totalorder %s38, %s39
      %p50 = scmp.eq.s32.totalorder %s30, 0
      %p51 = por %p49, %p50
      %p52 = scmp.ne.s32.totalorder %s38, %s39
      %p53 = scmp.eq.s32.totalorder %s31, 1
      %p54 = por %p52, %p53
      %p56 = scmp.ne.s32.totalorder %s39, %s55
      %p57 = scmp.eq.s32.totalorder %s31, 0
      %p58 = por %p56, %p57
      %s60 = sadd.s32 %s59, 1
      %p63 = scmp.eq.s32.totalorder %s25, 1
      %p64 = scmp.ne.s32.totalorder %s59, %s61
      %p65 = scmp.eq.s32.totalorder %s25, 0
      %p66 = por %p64, %p65
      %p67 = scmp.ne.s32.totalorder %s59, %s61
      %p68 = scmp.eq.s32.totalorder %s30, 1
      %p69 = por %p67, %p68
      %p70 = scmp.ne.s32.totalorder %s61, %s62
      %p71 = scmp.eq.s32.totalorder %s30, 0
      %p72 = por %p70, %p71
      %p73 = scmp.ne.s32.totalorder %s61, %s62
      %p74 = scmp.eq.s32.totalorder %s31, 1
      %p75 = por %p73, %p74
      %p77 = scmp.ne.s32.totalorder %s62, %s76
      %p78 = scmp.eq.s32.totalorder %s31, 0
      %p79 = por %p77, %p78
      %s81 = sadd.s32 %s80, 1
      %p84 = scmp.eq.s32.totalorder %s25, 1
      %p85 = scmp.ne.s32.totalorder %s80, %s82
      %p86 = scmp.eq.s32.totalorder %s25, 0
      %p87 = por %p85, %p86
      %p88 = scmp.ne.s32.totalorder %s80, %s82
      %p89 = scmp.eq.s32.totalorder %s30, 1
      %p90 = por %p88, %p89
      %p91 = scmp.ne.s32.totalorder %s82, %s83
      %p92 = scmp.eq.s32.totalorder %s30, 0
      %p93 = por %p91, %p92
      %p94 = scmp.ne.s32.totalorder %s82, %s83
      %p95 = scmp.eq.s32.totalorder %s31, 1
      %p96 = por %p94, %p95
      %p98 = scmp.ne.s32.totalorder %s83, %s97
      %p99 = scmp.eq.s32.totalorder %s31, 0
      %p100 = por %p98, %p99
      %s102 = sadd.s32 %s101, 1
      %p105 = scmp.eq.s32.totalorder %s25, 1
      %p106 = scmp.ne.s32.totalorder %s101, %s103
      %p107 = scmp.eq.s32.totalorder %s25, 0
      %p108 = por %p106, %p107
      %p109 = scmp.ne.s32.totalorder %s101, %s103
      %p110 = scmp.eq.s32.totalorder %s30, 1
      %p111 = por %p109, %p110
      %p112 = scmp.ne.s32.totalorder %s103, %s104
      %p113 = scmp.eq.s32.totalorder %s30, 0
      %p114 = por %p112, %p113
      %p115 = scmp.ne.s32.totalorder %s103, %s104
      %p116 = scmp.eq.s32.totalorder %s31, 1
      %p117 = por %p115, %p116
      %p119 = scmp.ne.s32.totalorder %s104, %s118
      %p120 = scmp.eq.s32.totalorder %s31, 0
      %p121 = por %p119, %p120
      %s123 = sadd.s32 %s122, 1
      %p126 = scmp.eq.s32.totalorder %s25, 1
      %p127 = scmp.ne.s32.totalorder %s122, %s124
      %p128 = scmp.eq.s32.totalorder %s25, 0
      %p129 = por %p127, %p128
      %p130 = scmp.ne.s32.totalorder %s122, %s124
      %p131 = scmp.eq.s32.totalorder %s30, 1
      %p132 = por %p130, %p131
      %p133 = scmp.ne.s32.totalorder %s124, %s125
      %p134 = scmp.eq.s32.totalorder %s30, 0
      %p135 = por %p133, %p134
      %p136 = scmp.ne.s32.totalorder %s124, %s125
      %p137 = scmp.eq.s32.totalorder %s31, 1
      %p138 = por %p136, %p137
      %p140 = scmp.ne.s32.totalorder %s125, %s139
      %p141 = scmp.eq.s32.totalorder %s31, 0
      %p142 = por %p140, %p141
      %s144 = sadd.s32 %s143, 1
      %p147 = scmp.eq.s32.totalorder %s25, 1
      %p148 = scmp.ne.s32.totalorder %s143, %s145
      %p149 = scmp.eq.s32.totalorder %s25, 0
      %p150 = por %p148, %p149
      %p151 = scmp.ne.s32.totalorder %s143, %s145
      %p152 = scmp.eq.s32.totalorder %s30, 1
      %p153 = por %p151, %p152
      %p154 = scmp.ne.s32.totalorder %s145, %s146
      %p155 = scmp.eq.s32.totalorder %s30, 0
      %p156 = por %p154, %p155
      %p157 = scmp.ne.s32.totalorder %s145, %s146
      %p158 = scmp.eq.s32.totalorder %s31, 1
      %p159 = por %p157, %p158
      %p161 = scmp.ne.s32.totalorder %s146, %s160
      %p162 = scmp.eq.s32.totalorder %s31, 0
      %p163 = por %p161, %p162
      %s165 = sadd.s32 %s164, 1
      %p168 = scmp.eq.s32.totalorder %s25, 1
      %p169 = scmp.ne.s32.totalorder %s164, %s166
      %p170 = scmp.eq.s32.totalorder %s25, 0
      %p171 = por %p169, %p170
      %p172 = scmp.ne.s32.totalorder %s164, %s166
      %p173 = scmp.eq.s32.totalorder %s30, 1
      %p174 = por %p172, %p173
      %p175 = scmp.ne.s32.totalorder %s166, %s167
      %p176 = scmp.eq.s32.totalorder %s30, 0
      %p177 = por %p175, %p176
      %p178 = scmp.ne.s32.totalorder %s166, %s167
      %p179 = scmp.eq.s32.totalorder %s31, 1
      %p180 = por %p178, %p179
      %p182 = scmp.ne.s32.totalorder %s167, %s181
      %p183 = scmp.eq.s32.totalorder %s31, 0
      %p184 = por %p182, %p183
      %s186 = sadd.s32 %s185, 1
      %p189 = scmp.eq.s32.totalorder %s25, 1
      %p190 = scmp.ne.s32.totalorder %s185, %s187
      %p191 = scmp.eq.s32.totalorder %s25, 0
      %p192 = por %p190, %p191
      %p193 = scmp.ne.s32.totalorder %s185, %s187
      %p194 = scmp.eq.s32.totalorder %s30, 1
      %p195 = por %p193, %p194
      %p196 = scmp.ne.s32.totalorder %s187, %s188
      %p197 = scmp.eq.s32.totalorder %s30, 0
      %p198 = por %p196, %p197
      %p199 = scmp.ne.s32.totalorder %s187, %s188
      %p200 = scmp.eq.s32.totalorder %s31, 1
      %p201 = por %p199, %p200
      %p203 = scmp.ne.s32.totalorder %s188, %s202
      %p204 = scmp.eq.s32.totalorder %s31, 0
      %p205 = por %p203, %p204
      %s207 = sadd.s32 %s206, 1
      %p210 = scmp.eq.s32.totalorder %s25, 1
      %p211 = scmp.ne.s32.totalorder %s206, %s208
      %p212 = scmp.eq.s32.totalorder %s25, 0
      %p213 = por %p211, %p212
      %p214 = scmp.ne.s32.totalorder %s206, %s208
      %p215 = scmp.eq.s32.totalorder %s30, 1
      %p216 = por %p214, %p215
      %p217 = scmp.ne.s32.totalorder %s208, %s209
      %p218 = scmp.eq.s32.totalorder %s30, 0
      %p219 = por %p217, %p218
      %p220 = scmp.ne.s32.totalorder %s208, %s209
      %p221 = scmp.eq.s32.totalorder %s31, 1
      %p222 = por %p220, %p221
      %p224 = scmp.ne.s32.totalorder %s209, %s223
      %p225 = scmp.eq.s32.totalorder %s31, 0
      %p226 = por %p224, %p225
      %s227 = ssub.s32 %s25, %s32
      %p228 = scmp.eq.s32.totalorder %s227, 0
      %s230 = sadd.s32 %s229, 1
      %s231 = scalar_select %p228, %s229, %s230
      %p234 = pneg %p228
      %p235 = scmp.eq.s32.totalorder %s25, 1
      %p236 = por %p234, %p235
      %p237 = scmp.ne.s32.totalorder %s229, %s232
      %p238 = scmp.eq.s32.totalorder %s25, 0
      %p239 = por %p237, %p238
      %p240 = scmp.ne.s32.totalorder %s229, %s232
      %p241 = scmp.eq.s32.totalorder %s30, 1
      %p242 = por %p240, %p241
      %p243 = scmp.ne.s32.totalorder %s232, %s233
      %p244 = scmp.eq.s32.totalorder %s30, 0
      %p245 = por %p243, %p244
      %p246 = scmp.ne.s32.totalorder %s232, %s233
      %p247 = scmp.eq.s32.totalorder %s31, 1
      %p248 = por %p246, %p247
      %p250 = scmp.ne.s32.totalorder %s233, %s249
      %p251 = scmp.eq.s32.totalorder %s31, 0
      %p252 = por %p250, %p251
      %p253 = scmp.le.s32.totalorder 1, %s25
      %p254 = scmp.lt.s32.totalorder %s25, 3
      %p255 = pnand %p253, %p254
      %p256 = pneg %p255
      // Predicated region
      $region9: #{tpu_custom_call.1} parent=5 // pred_check
        _
      $region10: #{tpu_custom_call.1} parent=5 // pred_check_branch
        %258 = sbr.rel (%p255) target = $region12
      $region11: #{tpu_custom_call.1} parent=5 // pred_region
        %s259 = ssub.s32 %s25, 1
        // Predicated region
        $region13: #{tpu_custom_call.1} parent=11 // pred_check
          %p260 = pneg %p72
        $region14: #{tpu_custom_call.1} parent=11 // pred_check_branch
          %262 = sbr.rel (%p260) target = $region16
        $region15: #{tpu_custom_call.1} parent=11 // pred_region
          %s264 = ssub.s32 128, 128
          %265 = vsyncadd [#allocation6], %s264
          %s267 = sshll.u32 [#allocation5], 4
          %s268 = int_to_ptr.vmem [resolvable:$true] %s267
          %270 = dma.hbm_to_vmem [thread:$0]  %s1, 128, %s268, [#allocation6]
        $region16: #{tpu_custom_call.1} parent=11 // pred_fallthru
          _
        // Predicated region
        $region17: #{tpu_custom_call.1} parent=11 // pred_check
          %p271 = pneg %p93
        $region18: #{tpu_custom_call.1} parent=11 // pred_check_branch
          %273 = sbr.rel (%p271) target = $region20
        $region19: #{tpu_custom_call.1} parent=11 // pred_region
          %s275 = ssub.s32 32, 32
          %276 = vsyncadd [#allocation6], %s275
          %s278 = sshll.u32 [#allocation7], 4
          %s279 = int_to_ptr.vmem [resolvable:$true] %s278
          %281 = dma.hbm_to_vmem [thread:$0]  %s2, 32, %s279, [#allocation6]
        $region20: #{tpu_custom_call.1} parent=11 // pred_fallthru
          _
        // Predicated region
        $region21: #{tpu_custom_call.1} parent=11 // pred_check
          %p282 = pneg %p114
        $region22: #{tpu_custom_call.1} parent=11 // pred_check_branch
          %284 = sbr.rel (%p282) target = $region24
        $region23: #{tpu_custom_call.1} parent=11 // pred_region
          %s286 = ssub.s32 4096, 4096
          %287 = vsyncadd [#allocation9], %s286
          %s288 = sshll.u32 [#allocation8], 4
          %s289 = int_to_ptr.vmem [resolvable:$true] %s288
          %294 = dma.hbm_to_vmem [thread:$0]  %s3, 4096, %s289, [#allocation9], 128, 128, 8
        $region24: #{tpu_custom_call.1} parent=11 // pred_fallthru
          _
        // Predicated region
        $region25: #{tpu_custom_call.1} parent=11 // pred_check
          %p295 = pneg %p135
        $region26: #{tpu_custom_call.1} parent=11 // pred_check_branch
          %297 = sbr.rel (%p295) target = $region28
        $region27: #{tpu_custom_call.1} parent=11 // pred_region
          %s299 = ssub.s32 32, 32
          %300 = vsyncadd [#allocation9], %s299
          %s302 = sshll.u32 [#allocation10], 4
          %s303 = int_to_ptr.vmem [resolvable:$true] %s302
          %305 = dma.hbm_to_vmem [thread:$0]  %s4, 32, %s303, [#allocation9]
        $region28: #{tpu_custom_call.1} parent=11 // pred_fallthru
          _
        // Predicated region
        $region29: #{tpu_custom_call.1} parent=11 // pred_check
          %p306 = pneg %p156
        $region30: #{tpu_custom_call.1} parent=11 // pred_check_branch
          %308 = sbr.rel (%p306) target = $region32
        $region31: #{tpu_custom_call.1} parent=11 // pred_region
          %s310 = ssub.s32 4096, 4096
          %311 = vsyncadd [#allocation12], %s310
          %s312 = sshll.u32 [#allocation11], 4
          %s313 = int_to_ptr.vmem [resolvable:$true] %s312
          %318 = dma.hbm_to_vmem [thread:$0]  %s5, 4096, %s313, [#allocation12], 128, 128, 8
        $region32: #{tpu_custom_call.1} parent=11 // pred_fallthru
          _
        // Predicated region
        $region33: #{tpu_custom_call.1} parent=11 // pred_check
          %p319 = pneg %p177
        $region34: #{tpu_custom_call.1} parent=11 // pred_check_branch
          %321 = sbr.rel (%p319) target = $region36
        $region35: #{tpu_custom_call.1} parent=11 // pred_region
          %s323 = ssub.s32 32, 32
          %324 = vsyncadd [#allocation12], %s323
          %s326 = sshll.u32 [#allocation13], 4
          %s327 = int_to_ptr.vmem [resolvable:$true] %s326
          %329 = dma.hbm_to_vmem [thread:$0]  %s6, 32, %s327, [#allocation12]
        $region36: #{tpu_custom_call.1} parent=11 // pred_fallthru
          _
        // Predicated region
        $region37: #{tpu_custom_call.1} parent=11 // pred_check
          %p330 = pneg %p198
        $region38: #{tpu_custom_call.1} parent=11 // pred_check_branch
          %332 = sbr.rel (%p330) target = $region40
        $region39: #{tpu_custom_call.1} parent=11 // pred_region
          %s334 = ssub.s32 2048, 2048
          %335 = vsyncadd [#allocation15], %s334
          %s336 = sshll.u32 [#allocation14], 4
          %s337 = int_to_ptr.vmem [resolvable:$true] %s336
          %342 = dma.hbm_to_vmem [thread:$0]  %s7, 2048, %s337, [#allocation15], 64, 64, 4
        $region40: #{tpu_custom_call.1} parent=11 // pred_fallthru
          _
        // Predicated region
        $region41: #{tpu_custom_call.1} parent=11 // pred_check
          %p343 = pneg %p219
        $region42: #{tpu_custom_call.1} parent=11 // pred_check_branch
          %345 = sbr.rel (%p343) target = $region44
        $region43: #{tpu_custom_call.1} parent=11 // pred_region
          %s347 = ssub.s32 16, 16
          %348 = vsyncadd [#allocation15], %s347
          %s350 = sshll.u32 [#allocation16], 4
          %s351 = int_to_ptr.vmem [resolvable:$true] %s350
          %353 = dma.hbm_to_vmem [thread:$0]  %s8, 16, %s351, [#allocation15]
        $region44: #{tpu_custom_call.1} parent=11 // pred_fallthru
          _
      $region12: #{tpu_custom_call.1} parent=5 // pred_fallthru
        _
      %p354 = scmp.lt.s32.totalorder %s25, 2
      // Predicated region
      $region45: #{tpu_custom_call.1} parent=5 // pred_check
        %p355 = pneg %p354
      $region46: #{tpu_custom_call.1} parent=5 // pred_check_branch
        %357 = sbr.rel (%p355) target = $region48
      $region47: #{tpu_custom_call.1} parent=5 // pred_region
        // Predicated region
        $region49: #{tpu_custom_call.1} parent=47 // pred_check
          %p358 = pneg %p45
        $region50: #{tpu_custom_call.1} parent=47 // pred_check_branch
          %360 = sbr.rel (%p358) target = $region52
        $region51: #{tpu_custom_call.1} parent=47 // pred_region
          %s361 = sand.u32 %s35, 1
          %s362 = scalar_lea.sflag [#allocation3], %s361
          %s363 = sand.u32 %s35, 1
          %s364 = smul.addr %s363, 8
          %s365 = scalar_lea.vmem [#allocation2], %s364
          %s367 = ssub.s32 128, 128
          %368 = vsyncadd %s362, %s367
          %s369 = smul.addr %s25, 128
          %s370 = scalar_lea.hbm %s0, %s369
          %s372 = sshll.u32 %s365, 4
          %s373 = int_to_ptr.vmem [resolvable:$true] %s372
          %375 = dma.hbm_to_vmem [thread:$0]  %s370, 128, %s373, %s362
        $region52: #{tpu_custom_call.1} parent=47 // pred_fallthru
          _
      $region48: #{tpu_custom_call.1} parent=5 // pred_fallthru
        _
      %p376 = scmp.le.s32.totalorder 1, %s25
      %p377 = scmp.lt.s32.totalorder %s25, 3
      %p378 = pnand %p376, %p377
      %p379 = pneg %p378
      // Predicated region
      $region53: #{tpu_custom_call.1} parent=5 // pred_check
        _
      $region54: #{tpu_custom_call.1} parent=5 // pred_check_branch
        %381 = sbr.rel (%p378) target = $region56
      $region55: #{tpu_custom_call.1} parent=5 // pred_region
        %s382 = ssub.s32 %s25, 1
        %s383 = sand.u32 %s38, 1
        %s384 = scalar_lea.sflag [#allocation3], %s383
        %s385 = sand.u32 %s38, 1
        %s386 = smul.addr %s385, 8
        %s387 = scalar_lea.vmem [#allocation2], %s386
        // Predicated region
        $region57: #{tpu_custom_call.1} parent=55 // pred_check
          %p388 = pneg %p51
        $region58: #{tpu_custom_call.1} parent=55 // pred_check_branch
          %390 = sbr.rel (%p388) target = $region60
        $region59: #{tpu_custom_call.1} parent=55 // pred_region
          %391 = dma.done %s384, 128
        $region60: #{tpu_custom_call.1} parent=55 // pred_fallthru
          _
        // Predicated region
        $region61: #{tpu_custom_call.1} parent=55 // pred_check
          %p392 = pneg %p72
        $region62: #{tpu_custom_call.1} parent=55 // pred_check_branch
          %394 = sbr.rel (%p392) target = $region64
        $region63: #{tpu_custom_call.1} parent=55 // pred_region
          %395 = dma.done [#allocation6], 128
        $region64: #{tpu_custom_call.1} parent=55 // pred_fallthru
          _
        // Predicated region
        $region65: #{tpu_custom_call.1} parent=55 // pred_check
          %p396 = pneg %p93
        $region66: #{tpu_custom_call.1} parent=55 // pred_check_branch
          %398 = sbr.rel (%p396) target = $region68
        $region67: #{tpu_custom_call.1} parent=55 // pred_region
          %399 = dma.done [#allocation6], 32
        $region68: #{tpu_custom_call.1} parent=55 // pred_fallthru
          _
        // Predicated region
        $region69: #{tpu_custom_call.1} parent=55 // pred_check
          %p400 = pneg %p114
        $region70: #{tpu_custom_call.1} parent=55 // pred_check_branch
          %402 = sbr.rel (%p400) target = $region72
        $region71: #{tpu_custom_call.1} parent=55 // pred_region
          %403 = dma.done [#allocation9], 4096
        $region72: #{tpu_custom_call.1} parent=55 // pred_fallthru
          _
        // Predicated region
        $region73: #{tpu_custom_call.1} parent=55 // pred_check
          %p404 = pneg %p135
        $region74: #{tpu_custom_call.1} parent=55 // pred_check_branch
          %406 = sbr.rel (%p404) target = $region76
        $region75: #{tpu_custom_call.1} parent=55 // pred_region
          %407 = dma.done [#allocation9], 32
        $region76: #{tpu_custom_call.1} parent=55 // pred_fallthru
          _
        // Predicated region
        $region77: #{tpu_custom_call.1} parent=55 // pred_check
          %p408 = pneg %p156
        $region78: #{tpu_custom_call.1} parent=55 // pred_check_branch
          %410 = sbr.rel (%p408) target = $region80
        $region79: #{tpu_custom_call.1} parent=55 // pred_region
          %411 = dma.done [#allocation12], 4096
        $region80: #{tpu_custom_call.1} parent=55 // pred_fallthru
          _
        // Predicated region
        $region81: #{tpu_custom_call.1} parent=55 // pred_check
          %p412 = pneg %p177
        $region82: #{tpu_custom_call.1} parent=55 // pred_check_branch
          %414 = sbr.rel (%p412) target = $region84
        $region83: #{tpu_custom_call.1} parent=55 // pred_region
          %415 = dma.done [#allocation12], 32
        $region84: #{tpu_custom_call.1} parent=55 // pred_fallthru
          _
        // Predicated region
        $region85: #{tpu_custom_call.1} parent=55 // pred_check
          %p416 = pneg %p198
        $region86: #{tpu_custom_call.1} parent=55 // pred_check_branch
          %418 = sbr.rel (%p416) target = $region88
        $region87: #{tpu_custom_call.1} parent=55 // pred_region
          %419 = dma.done [#allocation15], 2048
        $region88: #{tpu_custom_call.1} parent=55 // pred_fallthru
          _
        // Predicated region
        $region89: #{tpu_custom_call.1} parent=55 // pred_check
          %p420 = pneg %p219
        $region90: #{tpu_custom_call.1} parent=55 // pred_check_branch
          %422 = sbr.rel (%p420) target = $region92
        $region91: #{tpu_custom_call.1} parent=55 // pred_region
          %423 = dma.done [#allocation15], 16
        $region92: #{tpu_custom_call.1} parent=55 // pred_fallthru
          _
        %s424 = sand.u32 %s38, 1
        %s425 = scalar_lea.sflag [#allocation3], %s424
        %s426 = sand.u32 %s38, 1
        %s427 = smul.addr %s426, 8
        %s428 = scalar_lea.vmem [#allocation2], %s427
        %p429 = pneg %p51
        %p430 = pneg %p48
        %p431 = pneg %p72
        %p432 = pneg %p69
        %p433 = pneg %p93
        %p434 = pneg %p90
        %p435 = pneg %p114
        %p436 = pneg %p111
        %p437 = pneg %p135
        %p438 = pneg %p132
        %p439 = pneg %p156
        %p440 = pneg %p153
        %p441 = pneg %p177
        %p442 = pneg %p174
        %p443 = pneg %p198
        %p444 = pneg %p195
        %p445 = pneg %p219
        %p446 = pneg %p216
        %p447 = pneg %p245
        %p448 = pneg %p242
        %s449 = sand.u32 %s232, 1
        %s450 = scalar_lea.sflag [#allocation4], %s449
        %s451 = sand.u32 %s232, 1
        %s452 = smul.addr %s451, 8
        %s453 = scalar_lea.vmem [#allocation17], %s452
        %v455 = vld [vmem:[%s387] sm:$0xff]
        %v456 = vpack.c.bf16 %v455, %v455
        %v457 = vld [vmem:[#allocation5] sm:$0xff]
        %v458 = vld [vmem:[#allocation7] sm:$0x3]
        %v460 = vlaneseq
        %v461 = vshrl.u32 %v460, 7
        %v462 = vsub.s32 0, %v461
        %v463 = vrot.slane %v458, %v462
        %v464 = vlaneseq
        %v465 = vshrl.u32 %v464, 7
        %v466 = vsub.s32 1, %v465
        %v467 = vrot.slane %v458, %v466
        %v471 = vunpack.c.l.b16 %v457
        %v472 = vunpack.c.h.b16 %v457
        %v473 = vpack.c.b16 %v471, %v471
        %v474 = vpack.c.b16 %v472, %v472
        %vm475 = vcmask 64512
        %v477 = vsel %vm475, %v456, 0
        %vm479 = vcmask 1043456
        %v481 = vsel %vm479, %v473, 0
        %v484 = vsel %vm479, %v474, 0
        %486 = vmatprep.subr.bf16.mxu0 %v484
        %487 = vmatpush1.bf16.msra.mxu0 %v481
        %488 = vmatprep.subr.bf16.mxu0 0
        %489 = vmatpush1.bf16.msra.mxu0 0
        %490 = vmatprep.subr.bf16.mxu0 0
        %491 = vmatpush1.bf16.msra.mxu0 0
        %492 = vmatprep.subr.bf16.mxu0 0
        %493 = vmatpush1.bf16.msra.mxu0 0
        %494 = vmatprep.subr.bf16.mxu0 0
        %495 = vmatpush1.bf16.msra.mxu0 0
        %496 = vmatprep.subr.bf16.mxu0 0
        %497 = vmatpush1.bf16.msra.mxu0 0
        %498 = vmatprep.subr.bf16.mxu0 0
        %499 = vmatpush1.bf16.msra.mxu0 0
        %500 = vmatprep.subr.bf16.mxu0 0
        %501 = vmatpush1.bf16.msra.mxu0 0
        %502 = vmatprep.subr.bf16.mxu0 0
        %503 = vmatpush1.bf16.msra.mxu0 0
        %504 = vmatprep.subr.bf16.mxu0 0
        %505 = vmatpush1.bf16.msra.mxu0 0
        %506 = vmatprep.subr.bf16.mxu0 0
        %507 = vmatpush1.bf16.msra.mxu0 0
        %508 = vmatprep.subr.bf16.mxu0 0
        %509 = vmatpush1.bf16.msra.mxu0 0
        %510 = vmatprep.subr.bf16.mxu0 0
        %511 = vmatpush1.bf16.msra.mxu0 0
        %512 = vmatprep.subr.bf16.mxu0 0
        %513 = vmatpush1.bf16.msra.mxu0 0
        %514 = vmatprep.subr.bf16.mxu0 0
        %515 = vmatpush1.bf16.msra.mxu0 0
        %516 = vmatprep.subr.bf16.mxu0 0
        %517 = vmatpush1.bf16.msra.mxu0 0
        %518 = vmatprep.mubr.bf16.mxu0 0
        %519 = vmatmul.mubr.bf16.gmra.mrb[0].mxu0 %v477
        %v520 = vpop.f32.mrb[0].mxu0
        %v521 = vadd.f32 %v463, %v520
        %v522 = vpop.f32.mrb[0].mxu0
        %v523 = vadd.f32 %v467, %v522
        %v524 = vpop.f32.mrb[0].mxu0
        %v525 = vpop.f32.mrb[0].mxu0
        %526 = vdwg.mxu0
        %v527 = vmul.f32 %v521, 0.5
        %v528 = vmul.f32 %v523, 0.5
        %v529 = vtanh.pop %v527
        %v530 = vtanh.pop %v528
        %v531 = vmul.f32 %v529, 0.5
        %v532 = vmul.f32 %v530, 0.5
        %v533 = vadd.f32 %v531, 0.5
        %v534 = vadd.f32 %v532, 0.5
        %v535 = vpack.c.bf16 %v533, %v533
        %v536 = vpack.c.bf16 %v534, %v534
        %v537 = vld [vmem:[#allocation8] sm:$0xff]
        %v538 = vld [vmem:[#allocation8 + $0x8] sm:$0xff]
        %v539 = vld [vmem:[#allocation8 + $0x10] sm:$0xff]
        %v540 = vld [vmem:[#allocation8 + $0x18] sm:$0xff]
        %v541 = vld [vmem:[#allocation8 + $0x20] sm:$0xff]
        %v542 = vld [vmem:[#allocation8 + $0x28] sm:$0xff]
        %v543 = vld [vmem:[#allocation8 + $0x30] sm:$0xff]
        %v544 = vld [vmem:[#allocation8 + $0x38] sm:$0xff]
        %v545 = vld [vmem:[#allocation8 + $0x40] sm:$0xff]
        %v546 = vld [vmem:[#allocation8 + $0x48] sm:$0xff]
        %v547 = vld [vmem:[#allocation8 + $0x50] sm:$0xff]
        %v548 = vld [vmem:[#allocation8 + $0x58] sm:$0xff]
        %v549 = vld [vmem:[#allocation8 + $0x60] sm:$0xff]
        %v550 = vld [vmem:[#allocation8 + $0x68] sm:$0xff]
        %v551 = vld [vmem:[#allocation8 + $0x70] sm:$0xff]
        %v552 = vld [vmem:[#allocation8 + $0x78] sm:$0xff]
        %v553 = vld [vmem:[#allocation8 + $0x80] sm:$0xff]
        %v554 = vld [vmem:[#allocation8 + $0x88] sm:$0xff]
        %v555 = vld [vmem:[#allocation8 + $0x90] sm:$0xff]
        %v556 = vld [vmem:[#allocation8 + $0x98] sm:$0xff]
        %v557 = vld [vmem:[#allocation8 + $0xa0] sm:$0xff]
        %v558 = vld [vmem:[#allocation8 + $0xa8] sm:$0xff]
        %v559 = vld [vmem:[#allocation8 + $0xb0] sm:$0xff]
        %v560 = vld [vmem:[#allocation8 + $0xb8] sm:$0xff]
        %v561 = vld [vmem:[#allocation8 + $0xc0] sm:$0xff]
        %v562 = vld [vmem:[#allocation8 + $0xc8] sm:$0xff]
        %v563 = vld [vmem:[#allocation8 + $0xd0] sm:$0xff]
        %v564 = vld [vmem:[#allocation8 + $0xd8] sm:$0xff]
        %v565 = vld [vmem:[#allocation8 + $0xe0] sm:$0xff]
        %v566 = vld [vmem:[#allocation8 + $0xe8] sm:$0xff]
        %v567 = vld [vmem:[#allocation8 + $0xf0] sm:$0xff]
        %v568 = vld [vmem:[#allocation8 + $0xf8] sm:$0xff]
        %v569 = vld [vmem:[#allocation10] sm:$0x3]
        %v571 = vlaneseq
        %v572 = vshrl.u32 %v571, 7
        %v573 = vsub.s32 0, %v572
        %v574 = vrot.slane %v569, %v573
        %v575 = vlaneseq
        %v576 = vshrl.u32 %v575, 7
        %v577 = vsub.s32 1, %v576
        %v578 = vrot.slane %v569, %v577
        %v613 = vunpack.c.l.b16 %v537
        %v614 = vunpack.c.h.b16 %v537
        %v615 = vunpack.c.l.b16 %v538
        %v616 = vunpack.c.h.b16 %v538
        %v617 = vunpack.c.l.b16 %v539
        %v618 = vunpack.c.h.b16 %v539
        %v619 = vunpack.c.l.b16 %v540
        %v620 = vunpack.c.h.b16 %v540
        %v621 = vunpack.c.l.b16 %v541
        %v622 = vunpack.c.h.b16 %v541
        %v623 = vunpack.c.l.b16 %v542
        %v624 = vunpack.c.h.b16 %v542
        %v625 = vunpack.c.l.b16 %v543
        %v626 = vunpack.c.h.b16 %v543
        %v627 = vunpack.c.l.b16 %v544
        %v628 = vunpack.c.h.b16 %v544
        %v629 = vunpack.c.l.b16 %v545
        %v630 = vunpack.c.h.b16 %v545
        %v631 = vunpack.c.l.b16 %v546
        %v632 = vunpack.c.h.b16 %v546
        %v633 = vunpack.c.l.b16 %v547
        %v634 = vunpack.c.h.b16 %v547
        %v635 = vunpack.c.l.b16 %v548
        %v636 = vunpack.c.h.b16 %v548
        %v637 = vunpack.c.l.b16 %v549
        %v638 = vunpack.c.h.b16 %v549
        %v639 = vunpack.c.l.b16 %v550
        %v640 = vunpack.c.h.b16 %v550
        %v641 = vunpack.c.l.b16 %v551
        %v642 = vunpack.c.h.b16 %v551
        %v643 = vunpack.c.l.b16 %v552
        %v644 = vunpack.c.h.b16 %v552
        %v645 = vunpack.c.l.b16 %v553
        %v646 = vunpack.c.h.b16 %v553
        %v647 = vunpack.c.l.b16 %v554
        %v648 = vunpack.c.h.b16 %v554
        %v649 = vunpack.c.l.b16 %v555
        %v650 = vunpack.c.h.b16 %v555
        %v651 = vunpack.c.l.b16 %v556
        %v652 = vunpack.c.h.b16 %v556
        %v653 = vunpack.c.l.b16 %v557
        %v654 = vunpack.c.h.b16 %v557
        %v655 = vunpack.c.l.b16 %v558
        %v656 = vunpack.c.h.b16 %v558
        %v657 = vunpack.c.l.b16 %v559
        %v658 = vunpack.c.h.b16 %v559
        %v659 = vunpack.c.l.b16 %v560
        %v660 = vunpack.c.h.b16 %v560
        %v661 = vunpack.c.l.b16 %v561
        %v662 = vunpack.c.h.b16 %v561
        %v663 = vunpack.c.l.b16 %v562
        %v664 = vunpack.c.h.b16 %v562
        %v665 = vunpack.c.l.b16 %v563
        %v666 = vunpack.c.h.b16 %v563
        %v667 = vunpack.c.l.b16 %v564
        %v668 = vunpack.c.h.b16 %v564
        %v669 = vunpack.c.l.b16 %v565
        %v670 = vunpack.c.h.b16 %v565
        %v671 = vunpack.c.l.b16 %v566
        %v672 = vunpack.c.h.b16 %v566
        %v673 = vunpack.c.l.b16 %v567
        %v674 = vunpack.c.h.b16 %v567
        %v675 = vunpack.c.l.b16 %v568
        %v676 = vunpack.c.h.b16 %v568
        %v677 = vpack.c.b16 %v615, %v613
        %v678 = vpack.c.b16 %v616, %v614
        %v679 = vpack.c.b16 %v619, %v617
        %v680 = vpack.c.b16 %v620, %v618
        %v681 = vpack.c.b16 %v623, %v621
        %v682 = vpack.c.b16 %v624, %v622
        %v683 = vpack.c.b16 %v627, %v625
        %v684 = vpack.c.b16 %v628, %v626
        %v685 = vpack.c.b16 %v631, %v629
        %v686 = vpack.c.b16 %v632, %v630
        %v687 = vpack.c.b16 %v635, %v633
        %v688 = vpack.c.b16 %v636, %v634
        %v689 = vpack.c.b16 %v639, %v637
        %v690 = vpack.c.b16 %v640, %v638
        %v691 = vpack.c.b16 %v643, %v641
        %v692 = vpack.c.b16 %v644, %v642
        %v693 = vpack.c.b16 %v647, %v645
        %v694 = vpack.c.b16 %v648, %v646
        %v695 = vpack.c.b16 %v651, %v649
        %v696 = vpack.c.b16 %v652, %v650
        %v697 = vpack.c.b16 %v655, %v653
        %v698 = vpack.c.b16 %v656, %v654
        %v699 = vpack.c.b16 %v659, %v657
        %v700 = vpack.c.b16 %v660, %v658
        %v701 = vpack.c.b16 %v663, %v661
        %v702 = vpack.c.b16 %v664, %v662
        %v703 = vpack.c.b16 %v667, %v665
        %v704 = vpack.c.b16 %v668, %v666
        %v705 = vpack.c.b16 %v671, %v669
        %v706 = vpack.c.b16 %v672, %v670
        %v707 = vpack.c.b16 %v675, %v673
        %v708 = vpack.c.b16 %v676, %v674
        %741 = vmatprep.subr.bf16.mxu0 %v678
        %742 = vmatpush1.bf16.msra.mxu0 %v677
        %743 = vmatprep.subr.bf16.mxu0 %v680
        %744 = vmatpush1.bf16.msra.mxu0 %v679
        %745 = vmatprep.subr.bf16.mxu0 %v682
        %746 = vmatpush1.bf16.msra.mxu0 %v681
        %747 = vmatprep.subr.bf16.mxu0 %v684
        %748 = vmatpush1.bf16.msra.mxu0 %v683
        %749 = vmatprep.subr.bf16.mxu0 %v686
        %750 = vmatpush1.bf16.msra.mxu0 %v685
        %751 = vmatprep.subr.bf16.mxu0 %v688
        %752 = vmatpush1.bf16.msra.mxu0 %v687
        %753 = vmatprep.subr.bf16.mxu0 %v690
        %754 = vmatpush1.bf16.msra.mxu0 %v689
        %755 = vmatprep.subr.bf16.mxu0 %v692
        %756 = vmatpush1.bf16.msra.mxu0 %v691
        %757 = vmatprep.subr.bf16.mxu0 %v694
        %758 = vmatpush1.bf16.msra.mxu0 %v693
        %759 = vmatprep.subr.bf16.mxu0 %v696
        %760 = vmatpush1.bf16.msra.mxu0 %v695
        %761 = vmatprep.subr.bf16.mxu0 %v698
        %762 = vmatpush1.bf16.msra.mxu0 %v697
        %763 = vmatprep.subr.bf16.mxu0 %v700
        %764 = vmatpush1.bf16.msra.mxu0 %v699
        %765 = vmatprep.subr.bf16.mxu0 %v702
        %766 = vmatpush1.bf16.msra.mxu0 %v701
        %767 = vmatprep.subr.bf16.mxu0 %v704
        %768 = vmatpush1.bf16.msra.mxu0 %v703
        %769 = vmatprep.subr.bf16.mxu0 %v706
        %770 = vmatpush1.bf16.msra.mxu0 %v705
        %771 = vmatprep.subr.bf16.mxu0 %v708
        %772 = vmatpush1.bf16.msra.mxu0 %v707
        %773 = vmatprep.mubr.bf16.mxu0 %v536
        %774 = vmatmul.mubr.bf16.gmra.mrb[0].mxu0 %v535
        %v775 = vpop.f32.mrb[0].mxu0
        %v776 = vadd.f32 %v574, %v775
        %v777 = vpop.f32.mrb[0].mxu0
        %v778 = vadd.f32 %v578, %v777
        %v779 = vpop.f32.mrb[0].mxu0
        %v780 = vpop.f32.mrb[0].mxu0
        %781 = vdwg.mxu0
        %v782 = vmul.f32 %v776, 0.5
        %v783 = vmul.f32 %v778, 0.5
        %v784 = vtanh.pop %v782
        %v785 = vtanh.pop %v783
        %v786 = vmul.f32 %v784, 0.5
        %v787 = vmul.f32 %v785, 0.5
        %v788 = vadd.f32 %v786, 0.5
        %v789 = vadd.f32 %v787, 0.5
        %v790 = vpack.c.bf16 %v788, %v788
        %v791 = vpack.c.bf16 %v789, %v789
        %v792 = vld [vmem:[#allocation11] sm:$0xff]
        %v793 = vld [vmem:[#allocation11 + $0x8] sm:$0xff]
        %v794 = vld [vmem:[#allocation11 + $0x10] sm:$0xff]
        %v795 = vld [vmem:[#allocation11 + $0x18] sm:$0xff]
        %v796 = vld [vmem:[#allocation11 + $0x20] sm:$0xff]
        %v797 = vld [vmem:[#allocation11 + $0x28] sm:$0xff]
        %v798 = vld [vmem:[#allocation11 + $0x30] sm:$0xff]
        %v799 = vld [vmem:[#allocation11 + $0x38] sm:$0xff]
        %v800 = vld [vmem:[#allocation11 + $0x40] sm:$0xff]
        %v801 = vld [vmem:[#allocation11 + $0x48] sm:$0xff]
        %v802 = vld [vmem:[#allocation11 + $0x50] sm:$0xff]
        %v803 = vld [vmem:[#allocation11 + $0x58] sm:$0xff]
        %v804 = vld [vmem:[#allocation11 + $0x60] sm:$0xff]
        %v805 = vld [vmem:[#allocation11 + $0x68] sm:$0xff]
        %v806 = vld [vmem:[#allocation11 + $0x70] sm:$0xff]
        %v807 = vld [vmem:[#allocation11 + $0x78] sm:$0xff]
        %v808 = vld [vmem:[#allocation11 + $0x80] sm:$0xff]
        %v809 = vld [vmem:[#allocation11 + $0x88] sm:$0xff]
        %v810 = vld [vmem:[#allocation11 + $0x90] sm:$0xff]
        %v811 = vld [vmem:[#allocation11 + $0x98] sm:$0xff]
        %v812 = vld [vmem:[#allocation11 + $0xa0] sm:$0xff]
        %v813 = vld [vmem:[#allocation11 + $0xa8] sm:$0xff]
        %v814 = vld [vmem:[#allocation11 + $0xb0] sm:$0xff]
        %v815 = vld [vmem:[#allocation11 + $0xb8] sm:$0xff]
        %v816 = vld [vmem:[#allocation11 + $0xc0] sm:$0xff]
        %v817 = vld [vmem:[#allocation11 + $0xc8] sm:$0xff]
        %v818 = vld [vmem:[#allocation11 + $0xd0] sm:$0xff]
        %v819 = vld [vmem:[#allocation11 + $0xd8] sm:$0xff]
        %v820 = vld [vmem:[#allocation11 + $0xe0] sm:$0xff]
        %v821 = vld [vmem:[#allocation11 + $0xe8] sm:$0xff]
        %v822 = vld [vmem:[#allocation11 + $0xf0] sm:$0xff]
        %v823 = vld [vmem:[#allocation11 + $0xf8] sm:$0xff]
        %v824 = vld [vmem:[#allocation13] sm:$0x3]
        %v826 = vlaneseq
        %v827 = vshrl.u32 %v826, 7
        %v828 = vsub.s32 0, %v827
        %v829 = vrot.slane %v824, %v828
        %v830 = vlaneseq
        %v831 = vshrl.u32 %v830, 7
        %v832 = vsub.s32 1, %v831
        %v833 = vrot.slane %v824, %v832
        %v868 = vunpack.c.l.b16 %v792
        %v869 = vunpack.c.h.b16 %v792
        %v870 = vunpack.c.l.b16 %v793
        %v871 = vunpack.c.h.b16 %v793
        %v872 = vunpack.c.l.b16 %v794
        %v873 = vunpack.c.h.b16 %v794
        %v874 = vunpack.c.l.b16 %v795
        %v875 = vunpack.c.h.b16 %v795
        %v876 = vunpack.c.l.b16 %v796
        %v877 = vunpack.c.h.b16 %v796
        %v878 = vunpack.c.l.b16 %v797
        %v879 = vunpack.c.h.b16 %v797
        %v880 = vunpack.c.l.b16 %v798
        %v881 = vunpack.c.h.b16 %v798
        %v882 = vunpack.c.l.b16 %v799
        %v883 = vunpack.c.h.b16 %v799
        %v884 = vunpack.c.l.b16 %v800
        %v885 = vunpack.c.h.b16 %v800
        %v886 = vunpack.c.l.b16 %v801
        %v887 = vunpack.c.h.b16 %v801
        %v888 = vunpack.c.l.b16 %v802
        %v889 = vunpack.c.h.b16 %v802
        %v890 = vunpack.c.l.b16 %v803
        %v891 = vunpack.c.h.b16 %v803
        %v892 = vunpack.c.l.b16 %v804
        %v893 = vunpack.c.h.b16 %v804
        %v894 = vunpack.c.l.b16 %v805
        %v895 = vunpack.c.h.b16 %v805
        %v896 = vunpack.c.l.b16 %v806
        %v897 = vunpack.c.h.b16 %v806
        %v898 = vunpack.c.l.b16 %v807
        %v899 = vunpack.c.h.b16 %v807
        %v900 = vunpack.c.l.b16 %v808
        %v901 = vunpack.c.h.b16 %v808
        %v902 = vunpack.c.l.b16 %v809
        %v903 = vunpack.c.h.b16 %v809
        %v904 = vunpack.c.l.b16 %v810
        %v905 = vunpack.c.h.b16 %v810
        %v906 = vunpack.c.l.b16 %v811
        %v907 = vunpack.c.h.b16 %v811
        %v908 = vunpack.c.l.b16 %v812
        %v909 = vunpack.c.h.b16 %v812
        %v910 = vunpack.c.l.b16 %v813
        %v911 = vunpack.c.h.b16 %v813
        %v912 = vunpack.c.l.b16 %v814
        %v913 = vunpack.c.h.b16 %v814
        %v914 = vunpack.c.l.b16 %v815
        %v915 = vunpack.c.h.b16 %v815
        %v916 = vunpack.c.l.b16 %v816
        %v917 = vunpack.c.h.b16 %v816
        %v918 = vunpack.c.l.b16 %v817
        %v919 = vunpack.c.h.b16 %v817
        %v920 = vunpack.c.l.b16 %v818
        %v921 = vunpack.c.h.b16 %v818
        %v922 = vunpack.c.l.b16 %v819
        %v923 = vunpack.c.h.b16 %v819
        %v924 = vunpack.c.l.b16 %v820
        %v925 = vunpack.c.h.b16 %v820
        %v926 = vunpack.c.l.b16 %v821
        %v927 = vunpack.c.h.b16 %v821
        %v928 = vunpack.c.l.b16 %v822
        %v929 = vunpack.c.h.b16 %v822
        %v930 = vunpack.c.l.b16 %v823
        %v931 = vunpack.c.h.b16 %v823
        %v932 = vpack.c.b16 %v870, %v868
        %v933 = vpack.c.b16 %v871, %v869
        %v934 = vpack.c.b16 %v874, %v872
        %v935 = vpack.c.b16 %v875, %v873
        %v936 = vpack.c.b16 %v878, %v876
        %v937 = vpack.c.b16 %v879, %v877
        %v938 = vpack.c.b16 %v882, %v880
        %v939 = vpack.c.b16 %v883, %v881
        %v940 = vpack.c.b16 %v886, %v884
        %v941 = vpack.c.b16 %v887, %v885
        %v942 = vpack.c.b16 %v890, %v888
        %v943 = vpack.c.b16 %v891, %v889
        %v944 = vpack.c.b16 %v894, %v892
        %v945 = vpack.c.b16 %v895, %v893
        %v946 = vpack.c.b16 %v898, %v896
        %v947 = vpack.c.b16 %v899, %v897
        %v948 = vpack.c.b16 %v902, %v900
        %v949 = vpack.c.b16 %v903, %v901
        %v950 = vpack.c.b16 %v906, %v904
        %v951 = vpack.c.b16 %v907, %v905
        %v952 = vpack.c.b16 %v910, %v908
        %v953 = vpack.c.b16 %v911, %v909
        %v954 = vpack.c.b16 %v914, %v912
        %v955 = vpack.c.b16 %v915, %v913
        %v956 = vpack.c.b16 %v918, %v916
        %v957 = vpack.c.b16 %v919, %v917
        %v958 = vpack.c.b16 %v922, %v920
        %v959 = vpack.c.b16 %v923, %v921
        %v960 = vpack.c.b16 %v926, %v924
        %v961 = vpack.c.b16 %v927, %v925
        %v962 = vpack.c.b16 %v930, %v928
        %v963 = vpack.c.b16 %v931, %v929
        %996 = vmatprep.subr.bf16.mxu0 %v933
        %997 = vmatpush1.bf16.msra.mxu0 %v932
        %998 = vmatprep.subr.bf16.mxu0 %v935
        %999 = vmatpush1.bf16.msra.mxu0 %v934
        %1000 = vmatprep.subr.bf16.mxu0 %v937
        %1001 = vmatpush1.bf16.msra.mxu0 %v936
        %1002 = vmatprep.subr.bf16.mxu0 %v939
        %1003 = vmatpush1.bf16.msra.mxu0 %v938
        %1004 = vmatprep.subr.bf16.mxu0 %v941
        %1005 = vmatpush1.bf16.msra.mxu0 %v940
        %1006 = vmatprep.subr.bf16.mxu0 %v943
        %1007 = vmatpush1.bf16.msra.mxu0 %v942
        %1008 = vmatprep.subr.bf16.mxu0 %v945
        %1009 = vmatpush1.bf16.msra.mxu0 %v944
        %1010 = vmatprep.subr.bf16.mxu0 %v947
        %1011 = vmatpush1.bf16.msra.mxu0 %v946
        %1012 = vmatprep.subr.bf16.mxu0 %v949
        %1013 = vmatpush1.bf16.msra.mxu0 %v948
        %1014 = vmatprep.subr.bf16.mxu0 %v951
        %1015 = vmatpush1.bf16.msra.mxu0 %v950
        %1016 = vmatprep.subr.bf16.mxu0 %v953
        %1017 = vmatpush1.bf16.msra.mxu0 %v952
        %1018 = vmatprep.subr.bf16.mxu0 %v955
        %1019 = vmatpush1.bf16.msra.mxu0 %v954
        %1020 = vmatprep.subr.bf16.mxu0 %v957
        %1021 = vmatpush1.bf16.msra.mxu0 %v956
        %1022 = vmatprep.subr.bf16.mxu0 %v959
        %1023 = vmatpush1.bf16.msra.mxu0 %v958
        %1024 = vmatprep.subr.bf16.mxu0 %v961
        %1025 = vmatpush1.bf16.msra.mxu0 %v960
        %1026 = vmatprep.subr.bf16.mxu0 %v963
        %1027 = vmatpush1.bf16.msra.mxu0 %v962
        %1028 = vmatprep.mubr.bf16.mxu0 %v791
        %1029 = vmatmul.mubr.bf16.gmra.mrb[0].mxu0 %v790
        %v1030 = vpop.f32.mrb[0].mxu0
        %v1031 = vadd.f32 %v829, %v1030
        %v1032 = vpop.f32.mrb[0].mxu0
        %v1033 = vadd.f32 %v833, %v1032
        %v1034 = vpop.f32.mrb[0].mxu0
        %v1035 = vpop.f32.mrb[0].mxu0
        %1036 = vdwg.mxu0
        %v1037 = vmul.f32 %v1031, 0.5
        %v1038 = vmul.f32 %v1033, 0.5
        %v1039 = vtanh.pop %v1037
        %v1040 = vtanh.pop %v1038
        %v1041 = vmul.f32 %v1039, 0.5
        %v1042 = vmul.f32 %v1040, 0.5
        %v1043 = vadd.f32 %v1041, 0.5
        %v1044 = vadd.f32 %v1042, 0.5
        %v1045 = vpack.c.bf16 %v1043, %v1043
        %v1046 = vpack.c.bf16 %v1044, %v1044
        %v1047 = vld [vmem:[#allocation14] sm:$0xf]
        %v1048 = vld [vmem:[#allocation14 + $0x4] sm:$0xf]
        %v1049 = vld [vmem:[#allocation14 + $0x8] sm:$0xf]
        %v1050 = vld [vmem:[#allocation14 + $0xc] sm:$0xf]
        %v1051 = vld [vmem:[#allocation14 + $0x10] sm:$0xf]
        %v1052 = vld [vmem:[#allocation14 + $0x14] sm:$0xf]
        %v1053 = vld [vmem:[#allocation14 + $0x18] sm:$0xf]
        %v1054 = vld [vmem:[#allocation14 + $0x1c] sm:$0xf]
        %v1055 = vld [vmem:[#allocation14 + $0x20] sm:$0xf]
        %v1056 = vld [vmem:[#allocation14 + $0x24] sm:$0xf]
        %v1057 = vld [vmem:[#allocation14 + $0x28] sm:$0xf]
        %v1058 = vld [vmem:[#allocation14 + $0x2c] sm:$0xf]
        %v1059 = vld [vmem:[#allocation14 + $0x30] sm:$0xf]
        %v1060 = vld [vmem:[#allocation14 + $0x34] sm:$0xf]
        %v1061 = vld [vmem:[#allocation14 + $0x38] sm:$0xf]
        %v1062 = vld [vmem:[#allocation14 + $0x3c] sm:$0xf]
        %v1063 = vld [vmem:[#allocation14 + $0x40] sm:$0xf]
        %v1064 = vld [vmem:[#allocation14 + $0x44] sm:$0xf]
        %v1065 = vld [vmem:[#allocation14 + $0x48] sm:$0xf]
        %v1066 = vld [vmem:[#allocation14 + $0x4c] sm:$0xf]
        %v1067 = vld [vmem:[#allocation14 + $0x50] sm:$0xf]
        %v1068 = vld [vmem:[#allocation14 + $0x54] sm:$0xf]
        %v1069 = vld [vmem:[#allocation14 + $0x58] sm:$0xf]
        %v1070 = vld [vmem:[#allocation14 + $0x5c] sm:$0xf]
        %v1071 = vld [vmem:[#allocation14 + $0x60] sm:$0xf]
        %v1072 = vld [vmem:[#allocation14 + $0x64] sm:$0xf]
        %v1073 = vld [vmem:[#allocation14 + $0x68] sm:$0xf]
        %v1074 = vld [vmem:[#allocation14 + $0x6c] sm:$0xf]
        %v1075 = vld [vmem:[#allocation14 + $0x70] sm:$0xf]
        %v1076 = vld [vmem:[#allocation14 + $0x74] sm:$0xf]
        %v1077 = vld [vmem:[#allocation14 + $0x78] sm:$0xf]
        %v1078 = vld [vmem:[#allocation14 + $0x7c] sm:$0xf]
        %v1079 = vld [vmem:[#allocation16] sm:$0x1]
        %v1081 = vlaneseq
        %v1082 = vshrl.u32 %v1081, 7
        %v1083 = vsub.s32 0, %v1082
        %v1084 = vrot.slane %v1079, %v1083
        %v1118 = vunpack.c.l.b16 %v1047
        %v1119 = vunpack.c.l.b16 %v1048
        %v1120 = vunpack.c.l.b16 %v1049
        %v1121 = vunpack.c.l.b16 %v1050
        %v1122 = vunpack.c.l.b16 %v1051
        %v1123 = vunpack.c.l.b16 %v1052
        %v1124 = vunpack.c.l.b16 %v1053
        %v1125 = vunpack.c.l.b16 %v1054
        %v1126 = vunpack.c.l.b16 %v1055
        %v1127 = vunpack.c.l.b16 %v1056
        %v1128 = vunpack.c.l.b16 %v1057
        %v1129 = vunpack.c.l.b16 %v1058
        %v1130 = vunpack.c.l.b16 %v1059
        %v1131 = vunpack.c.l.b16 %v1060
        %v1132 = vunpack.c.l.b16 %v1061
        %v1133 = vunpack.c.l.b16 %v1062
        %v1134 = vunpack.c.l.b16 %v1063
        %v1135 = vunpack.c.l.b16 %v1064
        %v1136 = vunpack.c.l.b16 %v1065
        %v1137 = vunpack.c.l.b16 %v1066
        %v1138 = vunpack.c.l.b16 %v1067
        %v1139 = vunpack.c.l.b16 %v1068
        %v1140 = vunpack.c.l.b16 %v1069
        %v1141 = vunpack.c.l.b16 %v1070
        %v1142 = vunpack.c.l.b16 %v1071
        %v1143 = vunpack.c.l.b16 %v1072
        %v1144 = vunpack.c.l.b16 %v1073
        %v1145 = vunpack.c.l.b16 %v1074
        %v1146 = vunpack.c.l.b16 %v1075
        %v1147 = vunpack.c.l.b16 %v1076
        %v1148 = vunpack.c.l.b16 %v1077
        %v1149 = vunpack.c.l.b16 %v1078
        %v1150 = vpack.c.b16 %v1119, %v1118
        %v1151 = vpack.c.b16 %v1121, %v1120
        %v1152 = vpack.c.b16 %v1123, %v1122
        %v1153 = vpack.c.b16 %v1125, %v1124
        %v1154 = vpack.c.b16 %v1127, %v1126
        %v1155 = vpack.c.b16 %v1129, %v1128
        %v1156 = vpack.c.b16 %v1131, %v1130
        %v1157 = vpack.c.b16 %v1133, %v1132
        %v1158 = vpack.c.b16 %v1135, %v1134
        %v1159 = vpack.c.b16 %v1137, %v1136
        %v1160 = vpack.c.b16 %v1139, %v1138
        %v1161 = vpack.c.b16 %v1141, %v1140
        %v1162 = vpack.c.b16 %v1143, %v1142
        %v1163 = vpack.c.b16 %v1145, %v1144
        %v1164 = vpack.c.b16 %v1147, %v1146
        %v1165 = vpack.c.b16 %v1149, %v1148
        %1182 = vmatprep.subr.bf16.mxu0 0
        %1183 = vmatpush1.bf16.msra.mxu0 %v1150
        %1184 = vmatprep.subr.bf16.mxu0 0
        %1185 = vmatpush1.bf16.msra.mxu0 %v1151
        %1186 = vmatprep.subr.bf16.mxu0 0
        %1187 = vmatpush1.bf16.msra.mxu0 %v1152
        %1188 = vmatprep.subr.bf16.mxu0 0
        %1189 = vmatpush1.bf16.msra.mxu0 %v1153
        %1190 = vmatprep.subr.bf16.mxu0 0
        %1191 = vmatpush1.bf16.msra.mxu0 %v1154
        %1192 = vmatprep.subr.bf16.mxu0 0
        %1193 = vmatpush1.bf16.msra.mxu0 %v1155
        %1194 = vmatprep.subr.bf16.mxu0 0
        %1195 = vmatpush1.bf16.msra.mxu0 %v1156
        %1196 = vmatprep.subr.bf16.mxu0 0
        %1197 = vmatpush1.bf16.msra.mxu0 %v1157
        %1198 = vmatprep.subr.bf16.mxu0 0
        %1199 = vmatpush1.bf16.msra.mxu0 %v1158
        %1200 = vmatprep.subr.bf16.mxu0 0
        %1201 = vmatpush1.bf16.msra.mxu0 %v1159
        %1202 = vmatprep.subr.bf16.mxu0 0
        %1203 = vmatpush1.bf16.msra.mxu0 %v1160
        %1204 = vmatprep.subr.bf16.mxu0 0
        %1205 = vmatpush1.bf16.msra.mxu0 %v1161
        %1206 = vmatprep.subr.bf16.mxu0 0
        %1207 = vmatpush1.bf16.msra.mxu0 %v1162
        %1208 = vmatprep.subr.bf16.mxu0 0
        %1209 = vmatpush1.bf16.msra.mxu0 %v1163
        %1210 = vmatprep.subr.bf16.mxu0 0
        %1211 = vmatpush1.bf16.msra.mxu0 %v1164
        %1212 = vmatprep.subr.bf16.mxu0 0
        %1213 = vmatpush1.bf16.msra.mxu0 %v1165
        %1214 = vmatprep.mubr.bf16.mxu0 %v1046
        %1215 = vmatmul.mubr.bf16.gmra.mrb[0].mxu0 %v1045
        %v1216 = vpop.f32.mrb[0].mxu0
        %v1217 = vadd.f32 %v1084, %v1216
        %v1218 = vpop.f32.mrb[0].mxu0
        %v1219 = vpop.f32.mrb[0].mxu0
        %v1220 = vpop.f32.mrb[0].mxu0
        %1221 = vdwg.mxu0
        %vm1222 = vcmask 130048
        %1223 = vst.msk [vmem:[%s453] sm:$0xff] %vm1222, %v1217
        %s1224 = sand.u32 %s232, 1
        %s1225 = scalar_lea.sflag [#allocation4], %s1224
        %s1226 = sand.u32 %s232, 1
        %s1227 = smul.addr %s1226, 8
        %s1228 = scalar_lea.vmem [#allocation17], %s1227
        // Predicated region
        $region93: #{tpu_custom_call.1} parent=55 // pred_check
          %p1229 = pneg %p242
        $region94: #{tpu_custom_call.1} parent=55 // pred_check_branch
          %1231 = sbr.rel (%p1229) target = $region96
        $region95: #{tpu_custom_call.1} parent=55 // pred_region
          %s1233 = ssub.s32 128, 128
          %1234 = vsyncadd %s1225, %s1233
          %s1235 = smul.addr %s30, 128
          %s1236 = scalar_lea.hbm %s9, %s1235
          %s1238 = sshll.u32 %s1228, 4
          %s1239 = int_to_ptr.vmem [resolvable:$true] %s1238
          %1241 = dma.vmem_to_hbm [thread:$0]  %s1239, 128, %s1236, %s1225
        $region96: #{tpu_custom_call.1} parent=55 // pred_fallthru
          _
      $region56: #{tpu_custom_call.1} parent=5 // pred_fallthru
        _
      %p1242 = scmp.le.s32.totalorder 2, %s25
      // Predicated region
      $region97: #{tpu_custom_call.1} parent=5 // pred_check
        %p1243 = pneg %p1242
      $region98: #{tpu_custom_call.1} parent=5 // pred_check_branch
        %1245 = sbr.rel (%p1243) target = $region100
      $region99: #{tpu_custom_call.1} parent=5 // pred_region
        %s1246 = ssub.s32 %s25, 2
        // Predicated region
        $region101: #{tpu_custom_call.1} parent=99 // pred_check
          %p1247 = pneg %p248
        $region102: #{tpu_custom_call.1} parent=99 // pred_check_branch
          %1249 = sbr.rel (%p1247) target = $region104
        $region103: #{tpu_custom_call.1} parent=99 // pred_region
          %s1250 = sand.u32 %s233, 1
          %s1251 = scalar_lea.sflag [#allocation4], %s1250
          %s1252 = sand.u32 %s233, 1
          %s1253 = smul.addr %s1252, 8
          %s1254 = scalar_lea.vmem [#allocation17], %s1253
          %1255 = dma.done %s1251, 128
        $region104: #{tpu_custom_call.1} parent=99 // pred_fallthru
          _
      $region100: #{tpu_custom_call.1} parent=5 // pred_fallthru
        _
    $region6: #{tpu_custom_call.1} parent=1 // loop_footer
      %s29 = sadd.s32 1, %s25
    $region7: #{tpu_custom_call.1} parent=1 // loop_footer_branch
      %24 = sbr.rel target = $region3
    $region8: #{tpu_custom_call.1} parent=1 // loop_exit
      _
    %1256 = vsyncpa [#allocation3], 1
    %s1257 = scalar_lea.sflag [#allocation3], 1
    %1258 = vsyncpa %s1257, 1
    %1259 = vsyncpa [#allocation6], 1
    %1260 = vsyncpa [#allocation9], 1
    %1261 = vsyncpa [#allocation12], 1
    %1262 = vsyncpa [#allocation15], 1
    %1263 = vsyncpa [#allocation4], 1
    %s1264 = scalar_lea.sflag [#allocation4], 1
    %1265 = vsyncpa %s1264, 1

</llo_original>
